<compile_context>
chip_gen: v5e
topology: v5e:2x2
jax: 0.10.0
libtpu: 0.0.40
codegen_flags: <defaults>
</compile_context>

<pallas_src>
import functools

import numpy as np
import jax
import jax.numpy as jnp
from jax.experimental import pallas as pl
from jax.experimental.pallas import tpu as pltpu


def _interp_matrix_np(out_size: int, in_size: int) -> np.ndarray:
    """(out_size, in_size) 1-D linear interpolation matrix, align_corners=True."""
    m = np.zeros((out_size, in_size), dtype=np.float64)
    if out_size == 1 or in_size == 1:
        m[:, 0] = 1.0
        return m
    scale = (in_size - 1) / (out_size - 1)
    src = np.arange(out_size, dtype=np.float64) * scale
    lo = np.clip(np.floor(src).astype(np.int64), 0, in_size - 1)
    hi = np.minimum(lo + 1, in_size - 1)
    frac = src - lo
    rows = np.arange(out_size)
    m[rows, lo] += 1.0 - frac
    m[rows, hi] += frac
    return m


def _round_up(x: int, m: int) -> int:
    return ((x + m - 1) // m) * m


def _vmem_capacity_bytes() -> int:
    try:
        return int(pltpu.get_tpu_info().vmem_capacity_bytes)
    except Exception:
        # Conservative fallback = v7x per-TensorCore VMEM.
        return 64 * 1024 * 1024


def _is_v7x() -> bool:
    try:
        return "v7" in jax.devices()[0].device_kind.lower()
    except Exception:
        return False


def _pick_channel_batch(nc, step_bytes_fn, budget_bytes, prefer_even_grid,
                        cap=64):
    """Largest divisor of nc (<= cap) whose per-step VMEM estimate fits budget.

    On v7x ("parallel" axis shards over 2 TensorCores) prefer an even grid
    length when the grid is short, even if that halves the batch."""
    divisors = [d for d in range(1, nc + 1) if nc % d == 0 and d <= cap]
    fits = [d for d in divisors if step_bytes_fn(d) <= budget_bytes] or [1]
    best = max(fits)
    if prefer_even_grid and (nc // best) < 16:
        even = [d for d in fits if (nc // d) % 2 == 0]
        if even:
            return max(even)
    return best


def _make_kernel(B, Dp, HW, Do, HoWo, compute_dtype):
    def kernel(x_ref, akron_ref, ad_ref, o_ref, dstage_ref):
        # x_ref:      (B*Dp, HW)     lane-dense input rows (channel c, depth d)
        # akron_ref:  (HW, HoWo)     kron(ah, aw).T  -- fused H & W interpolation
        # ad_ref:     (Do, Dp)       depth interpolation (zero-padded columns)
        # o_ref:      (B, Do, HoWo)  lane-dense output block
        # dstage_ref: (Dp, B*HoWo)   staging for the single wide depth matmul

        # Fused H x W contraction: one big MXU matmul, result already in the
        # lane-dense (.., HoWo) layout.
        t = jnp.dot(x_ref[...], akron_ref[...],
                    preferred_element_type=jnp.float32)          # (B*Dp, HoWo) f32

        # Re-stage per channel as (Dp, B*HoWo): aligned sublane slices of t,
        # stored at 128-aligned lane offsets (unmasked when HoWo % 128 == 0).
        for b in range(B):
            dstage_ref[:, b * HoWo:(b + 1) * HoWo] = (
                t[b * Dp:(b + 1) * Dp, :].astype(compute_dtype))

        # Depth contraction as one wide matmul (fills the MXU columns).
        r = jnp.dot(ad_ref[...], dstage_ref[...],
                    preferred_element_type=jnp.float32)          # (Do, B*HoWo) f32

        # Store per-channel (Do, HoWo) slabs: aligned, lane-dense stores.
        for b in range(B):
            o_ref[b] = r[:, b * HoWo:(b + 1) * HoWo].astype(o_ref.dtype)

    return kernel


@functools.partial(jax.jit, static_argnames=("output_size",))
def output_layer(x: jnp.ndarray, output_size) -> jnp.ndarray:
    """Equivalent of OutputLayer.forward(x, output_size).

    x: (N, C, D, H, W).  output_size: (Do, Ho, Wo) tuple of python ints.
    """
    N, C, D, H, W = x.shape
    Do, Ho, Wo = output_size
    NC = N * C
    HW = H * W
    HoWo = Ho * Wo

    out_dtype = x.dtype
    compute_dtype = jnp.bfloat16 if x.dtype == jnp.bfloat16 else jnp.float32
    isz = x.dtype.itemsize
    osz = isz
    csz = np.dtype(compute_dtype).itemsize

    # ---- host-side float64 interpolation matrices -------------------------
    ah = _interp_matrix_np(Ho, H)                        # (Ho, H)
    aw = _interp_matrix_np(Wo, W)                        # (Wo, W)
    ad_np = _interp_matrix_np(Do, D)                     # (Do, D)
    akron_np = np.kron(ah, aw).T                         # (H*W, Ho*Wo)
    # TODO(synk): fall back to separable H/W matmuls when kron(ah, aw) would
    # not fit VMEM (very large spatial dims); fine for typical decoder shapes.

    # Pad D to a sublane multiple so every block dim / slice is (8,128)-aligned
    # for any channel batch; padded rows meet zero columns of ad -> contribute 0.
    Dp = _round_up(D, 8)
    ad_pad = np.zeros((Do, Dp), dtype=np.float64)
    ad_pad[:, :D] = ad_np

    akron = jnp.asarray(akron_np, dtype=compute_dtype)   # (HW, HoWo)
    ad = jnp.asarray(ad_pad, dtype=compute_dtype)        # (Do, Dp)

    # Lane-dense input layout (NC*Dp, H*W); the reshape is free, the D-pad is a
    # cheap single pass over the (small) input and skipped when D % 8 == 0.
    x_rows = x.reshape(NC, D, HW)
    if Dp != D:
        x_rows = jnp.pad(x_rows, ((0, 0), (0, Dp - D), (0, 0)))
    x_rows = x_rows.reshape(NC * Dp, HW)

    # ---- generation-aware VMEM budget & channel batch ----------------------
    vmem_cap = _vmem_capacity_bytes()
    budget = (vmem_cap * 7) // 10           # ~90 MiB on 128 MiB parts, ~45 on v7x
    vmem_limit = (vmem_cap * 3) // 4

    hw_pad = _round_up(HW, 128)
    howo_pad = _round_up(HoWo, 128)
    fixed_bytes = 2 * csz * (_round_up(HW, 8) * howo_pad             # akron (x2 buf)
                             + _round_up(Do, 8) * _round_up(Dp, 128))  # ad (x2 buf)

    def _step_bytes(b):
        return (
            fixed_bytes
            + 2 * isz * b * Dp * hw_pad                               # input block (x2)
            + 2 * osz * b * _round_up(Do, 8) * howo_pad               # output block (x2)
            + 4 * b * Dp * howo_pad                                   # t (f32)
            + csz * Dp * _round_up(b * HoWo, 128)                     # dstage scratch
            + 4 * _round_up(Do, 8) * _round_up(b * HoWo, 128)         # r (f32)
        )

    B = _pick_channel_batch(NC, _step_bytes, budget,
                            prefer_even_grid=_is_v7x())
    grid = NC // B

    flops = 2 * NC * (Dp * HW * HoWo + Do * Dp * HoWo)
    bytes_accessed = int(isz * NC * Dp * HW + osz * NC * Do * HoWo
                         + csz * (HW * HoWo + Do * Dp))

    out_flat = pl.pallas_call(
        _make_kernel(B, Dp, HW, Do, HoWo, compute_dtype),
        out_shape=jax.ShapeDtypeStruct((NC, Do, HoWo), out_dtype),
        grid_spec=pltpu.PrefetchScalarGridSpec(
            num_scalar_prefetch=0,
            grid=(grid,),
            in_specs=[
                pl.BlockSpec((B * Dp, HW), lambda i: (i, 0)),
                pl.BlockSpec((HW, HoWo), lambda i: (0, 0)),
                pl.BlockSpec((Do, Dp), lambda i: (0, 0)),
            ],
            out_specs=pl.BlockSpec((B, Do, HoWo), lambda i: (i, 0, 0)),
            scratch_shapes=[pltpu.VMEM((Dp, B * HoWo), compute_dtype)],
        ),
        compiler_params=pltpu.CompilerParams(
            dimension_semantics=("parallel",),
            vmem_limit_bytes=int(vmem_limit),
        ),
        cost_estimate=pl.CostEstimate(
            flops=flops, transcendentals=0, bytes_accessed=bytes_accessed),
    )(x_rows, akron, ad)

    return out_flat.reshape(N, C, Do, Ho, Wo)


def _reference(x, output_size):
    """Pure-JAX reference (same separable align_corners=True formulation)."""
    N, C, D, H, W = x.shape
    Do, Ho, Wo = output_size
    ad = jnp.asarray(_interp_matrix_np(Do, D), dtype=jnp.float32)
    ah = jnp.asarray(_interp_matrix_np(Ho, H), dtype=jnp.float32)
    aw = jnp.asarray(_interp_matrix_np(Wo, W), dtype=jnp.float32)
    xf = x.astype(jnp.float32)
    t = jnp.einsum('ncdhw,Ww->ncdhW', xf, aw)
    t = jnp.einsum('ncdhW,Hh->ncdHW', t, ah)
    t = jnp.einsum('ncdHW,Dd->ncDHW', t, ad)
    return t.astype(x.dtype)


if __name__ == "__main__":
    key = jax.random.PRNGKey(0)
    # Small NCDHW input (OutputLayer has no parameters of its own).
    x = jax.random.normal(key, (2, 4, 4, 8, 8), dtype=jnp.float32)
    output_size = (8, 16, 16)

    out = output_layer(x, output_size)
    out = jax.block_until_ready(out)

    assert out.shape == (2, 4, 8, 16, 16), out.shape

    ref = _reference(x, output_size)
    assert jnp.allclose(out, ref, atol=1e-4, rtol=1e-4), "mismatch vs reference"

    print("KERNEL_OK")
</pallas_src>

<mosaic_0001>
module attributes {stable_mosaic.version = 11 : i64} {
  func.func @kernel(%arg0: i32, %arg1: memref<64x64xf32, #tpu.memory_space<vmem>>, %arg2: memref<64x256xf32, #tpu.memory_space<vmem>>, %arg3: memref<8x8xf32, #tpu.memory_space<vmem>>, %arg4: memref<8x8x256xf32, #tpu.memory_space<vmem>>, %arg5: memref<8x2048xf32, #tpu.memory_space<vmem>>) attributes {dimension_semantics = [#tpu.dimension_semantics<parallel>], iteration_bounds = array<i64: 1>, scalar_prefetch = 0 : i64, scratch_operands = 1 : i64, tpu.core_type = #tpu.core_type<tc>, window_params = [{transform_indices = @transform_0, window_bounds = array<i64: 64, 64>}, {pipeline_mode = #tpu.pipeline_mode<synchronous>, transform_indices = @transform_1, window_bounds = array<i64: 64, 256>}, {pipeline_mode = #tpu.pipeline_mode<synchronous>, transform_indices = @transform_2, window_bounds = array<i64: 8, 8>}, {transform_indices = @transform_3, window_bounds = array<i64: 8, 8, 256>}]} {
    %c0 = arith.constant 0 : index
    %c0_0 = arith.constant 0 : index
    %0 = vector.load %arg1[%c0, %c0_0] : memref<64x64xf32, #tpu.memory_space<vmem>>, vector<64x64xf32>
    %c0_1 = arith.constant 0 : index
    %c0_2 = arith.constant 0 : index
    %1 = vector.load %arg2[%c0_1, %c0_2] : memref<64x256xf32, #tpu.memory_space<vmem>>, vector<64x256xf32>
    %cst = arith.constant dense<0.000000e+00> : vector<64x256xf32>
    %2 = tpu.matmul %0, %1, %cst {dimension_numbers = #tpu.dot_dimension_numbers<[1], [0], [0], [1], [0, 0, 1, 1], [], []>} : vector<64x64xf32>, vector<64x256xf32>, vector<64x256xf32> -> vector<64x256xf32>
    %3 = vector.extract_strided_slice %2 {offsets = [0, 0], sizes = [8, 256], strides = [1, 1]} : vector<64x256xf32> to vector<8x256xf32>
    %c0_3 = arith.constant 0 : index
    %c0_4 = arith.constant 0 : index
    %4 = vector.load %arg5[%c0_3, %c0_4] : memref<8x2048xf32, #tpu.memory_space<vmem>>, vector<8x256xf32>
    tpu.vector_store %arg5[%c0_3, %c0_4], %3 {strides = array<i32>} : memref<8x2048xf32, #tpu.memory_space<vmem>>, vector<8x256xf32>,
    %5 = vector.extract_strided_slice %2 {offsets = [8, 0], sizes = [8, 256], strides = [1, 1]} : vector<64x256xf32> to vector<8x256xf32>
    %c0_5 = arith.constant 0 : index
    %c256 = arith.constant 256 : index
    %6 = vector.load %arg5[%c0_5, %c256] : memref<8x2048xf32, #tpu.memory_space<vmem>>, vector<8x256xf32>
    tpu.vector_store %arg5[%c0_5, %c256], %5 {strides = array<i32>} : memref<8x2048xf32, #tpu.memory_space<vmem>>, vector<8x256xf32>,
    %7 = vector.extract_strided_slice %2 {offsets = [16, 0], sizes = [8, 256], strides = [1, 1]} : vector<64x256xf32> to vector<8x256xf32>
    %c0_6 = arith.constant 0 : index
    %c512 = arith.constant 512 : index
    %8 = vector.load %arg5[%c0_6, %c512] : memref<8x2048xf32, #tpu.memory_space<vmem>>, vector<8x256xf32>
    tpu.vector_store %arg5[%c0_6, %c512], %7 {strides = array<i32>} : memref<8x2048xf32, #tpu.memory_space<vmem>>, vector<8x256xf32>,
    %9 = vector.extract_strided_slice %2 {offsets = [24, 0], sizes = [8, 256], strides = [1, 1]} : vector<64x256xf32> to vector<8x256xf32>
    %c0_7 = arith.constant 0 : index
    %c768 = arith.constant 768 : index
    %10 = vector.load %arg5[%c0_7, %c768] : memref<8x2048xf32, #tpu.memory_space<vmem>>, vector<8x256xf32>
    tpu.vector_store %arg5[%c0_7, %c768], %9 {strides = array<i32>} : memref<8x2048xf32, #tpu.memory_space<vmem>>, vector<8x256xf32>,
    %11 = vector.extract_strided_slice %2 {offsets = [32, 0], sizes = [8, 256], strides = [1, 1]} : vector<64x256xf32> to vector<8x256xf32>
    %c0_8 = arith.constant 0 : index
    %c1024 = arith.constant 1024 : index
    %12 = vector.load %arg5[%c0_8, %c1024] : memref<8x2048xf32, #tpu.memory_space<vmem>>, vector<8x256xf32>
    tpu.vector_store %arg5[%c0_8, %c1024], %11 {strides = array<i32>} : memref<8x2048xf32, #tpu.memory_space<vmem>>, vector<8x256xf32>,
    %13 = vector.extract_strided_slice %2 {offsets = [40, 0], sizes = [8, 256], strides = [1, 1]} : vector<64x256xf32> to vector<8x256xf32>
    %c0_9 = arith.constant 0 : index
    %c1280 = arith.constant 1280 : index
    %14 = vector.load %arg5[%c0_9, %c1280] : memref<8x2048xf32, #tpu.memory_space<vmem>>, vector<8x256xf32>
    tpu.vector_store %arg5[%c0_9, %c1280], %13 {strides = array<i32>} : memref<8x2048xf32, #tpu.memory_space<vmem>>, vector<8x256xf32>,
    %15 = vector.extract_strided_slice %2 {offsets = [48, 0], sizes = [8, 256], strides = [1, 1]} : vector<64x256xf32> to vector<8x256xf32>
    %c0_10 = arith.constant 0 : index
    %c1536 = arith.constant 1536 : index
    %16 = vector.load %arg5[%c0_10, %c1536] : memref<8x2048xf32, #tpu.memory_space<vmem>>, vector<8x256xf32>
    tpu.vector_store %arg5[%c0_10, %c1536], %15 {strides = array<i32>} : memref<8x2048xf32, #tpu.memory_space<vmem>>, vector<8x256xf32>,
    %17 = vector.extract_strided_slice %2 {offsets = [56, 0], sizes = [8, 256], strides = [1, 1]} : vector<64x256xf32> to vector<8x256xf32>
    %c0_11 = arith.constant 0 : index
    %c1792 = arith.constant 1792 : index
    %18 = vector.load %arg5[%c0_11, %c1792] : memref<8x2048xf32, #tpu.memory_space<vmem>>, vector<8x256xf32>
    tpu.vector_store %arg5[%c0_11, %c1792], %17 {strides = array<i32>} : memref<8x2048xf32, #tpu.memory_space<vmem>>, vector<8x256xf32>,
    %c0_12 = arith.constant 0 : index
    %c0_13 = arith.constant 0 : index
    %19 = vector.load %arg3[%c0_12, %c0_13] : memref<8x8xf32, #tpu.memory_space<vmem>>, vector<8x8xf32>
    %c0_14 = arith.constant 0 : index
    %c0_15 = arith.constant 0 : index
    %20 = vector.load %arg5[%c0_14, %c0_15] : memref<8x2048xf32, #tpu.memory_space<vmem>>, vector<8x2048xf32>
    %cst_16 = arith.constant dense<0.000000e+00> : vector<8x2048xf32>
    %21 = tpu.matmul %19, %20, %cst_16 {dimension_numbers = #tpu.dot_dimension_numbers<[1], [0], [0], [1], [0, 0, 1, 1], [], []>} : vector<8x8xf32>, vector<8x2048xf32>, vector<8x2048xf32> -> vector<8x2048xf32>
    %22 = vector.extract_strided_slice %21 {offsets = [0, 0], sizes = [8, 256], strides = [1, 1]} : vector<8x2048xf32> to vector<8x256xf32>
    %c0_17 = arith.constant 0 : index
    %c0_18 = arith.constant 0 : index
    %c0_19 = arith.constant 0 : index
    %23 = vector.load %arg4[%c0_17, %c0_18, %c0_19] : memref<8x8x256xf32, #tpu.memory_space<vmem>>, vector<1x8x256xf32>
    %24 = vector.shape_cast %23 : vector<1x8x256xf32> to vector<8x256xf32>
    %25 = vector.shape_cast %22 : vector<8x256xf32> to vector<1x8x256xf32>
    tpu.vector_store %arg4[%c0_17, %c0_18, %c0_19], %25 {strides = array<i32>} : memref<8x8x256xf32, #tpu.memory_space<vmem>>, vector<1x8x256xf32>,
    %26 = vector.extract_strided_slice %21 {offsets = [0, 256], sizes = [8, 256], strides = [1, 1]} : vector<8x2048xf32> to vector<8x256xf32>
    %c1 = arith.constant 1 : index
    %c0_20 = arith.constant 0 : index
    %c0_21 = arith.constant 0 : index
    %27 = vector.load %arg4[%c1, %c0_20, %c0_21] : memref<8x8x256xf32, #tpu.memory_space<vmem>>, vector<1x8x256xf32>
    %28 = vector.shape_cast %27 : vector<1x8x256xf32> to vector<8x256xf32>
    %29 = vector.shape_cast %26 : vector<8x256xf32> to vector<1x8x256xf32>
    tpu.vector_store %arg4[%c1, %c0_20, %c0_21], %29 {strides = array<i32>} : memref<8x8x256xf32, #tpu.memory_space<vmem>>, vector<1x8x256xf32>,
    %30 = vector.extract_strided_slice %21 {offsets = [0, 512], sizes = [8, 256], strides = [1, 1]} : vector<8x2048xf32> to vector<8x256xf32>
    %c2 = arith.constant 2 : index
    %c0_22 = arith.constant 0 : index
    %c0_23 = arith.constant 0 : index
    %31 = vector.load %arg4[%c2, %c0_22, %c0_23] : memref<8x8x256xf32, #tpu.memory_space<vmem>>, vector<1x8x256xf32>
    %32 = vector.shape_cast %31 : vector<1x8x256xf32> to vector<8x256xf32>
    %33 = vector.shape_cast %30 : vector<8x256xf32> to vector<1x8x256xf32>
    tpu.vector_store %arg4[%c2, %c0_22, %c0_23], %33 {strides = array<i32>} : memref<8x8x256xf32, #tpu.memory_space<vmem>>, vector<1x8x256xf32>,
    %34 = vector.extract_strided_slice %21 {offsets = [0, 768], sizes = [8, 256], strides = [1, 1]} : vector<8x2048xf32> to vector<8x256xf32>
    %c3 = arith.constant 3 : index
    %c0_24 = arith.constant 0 : index
    %c0_25 = arith.constant 0 : index
    %35 = vector.load %arg4[%c3, %c0_24, %c0_25] : memref<8x8x256xf32, #tpu.memory_space<vmem>>, vector<1x8x256xf32>
    %36 = vector.shape_cast %35 : vector<1x8x256xf32> to vector<8x256xf32>
    %37 = vector.shape_cast %34 : vector<8x256xf32> to vector<1x8x256xf32>
    tpu.vector_store %arg4[%c3, %c0_24, %c0_25], %37 {strides = array<i32>} : memref<8x8x256xf32, #tpu.memory_space<vmem>>, vector<1x8x256xf32>,
    %38 = vector.extract_strided_slice %21 {offsets = [0, 1024], sizes = [8, 256], strides = [1, 1]} : vector<8x2048xf32> to vector<8x256xf32>
    %c4 = arith.constant 4 : index
    %c0_26 = arith.constant 0 : index
    %c0_27 = arith.constant 0 : index
    %39 = vector.load %arg4[%c4, %c0_26, %c0_27] : memref<8x8x256xf32, #tpu.memory_space<vmem>>, vector<1x8x256xf32>
    %40 = vector.shape_cast %39 : vector<1x8x256xf32> to vector<8x256xf32>
    %41 = vector.shape_cast %38 : vector<8x256xf32> to vector<1x8x256xf32>
    tpu.vector_store %arg4[%c4, %c0_26, %c0_27], %41 {strides = array<i32>} : memref<8x8x256xf32, #tpu.memory_space<vmem>>, vector<1x8x256xf32>,
    %42 = vector.extract_strided_slice %21 {offsets = [0, 1280], sizes = [8, 256], strides = [1, 1]} : vector<8x2048xf32> to vector<8x256xf32>
    %c5 = arith.constant 5 : index
    %c0_28 = arith.constant 0 : index
    %c0_29 = arith.constant 0 : index
    %43 = vector.load %arg4[%c5, %c0_28, %c0_29] : memref<8x8x256xf32, #tpu.memory_space<vmem>>, vector<1x8x256xf32>
    %44 = vector.shape_cast %43 : vector<1x8x256xf32> to vector<8x256xf32>
    %45 = vector.shape_cast %42 : vector<8x256xf32> to vector<1x8x256xf32>
    tpu.vector_store %arg4[%c5, %c0_28, %c0_29], %45 {strides = array<i32>} : memref<8x8x256xf32, #tpu.memory_space<vmem>>, vector<1x8x256xf32>,
    %46 = vector.extract_strided_slice %21 {offsets = [0, 1536], sizes = [8, 256], strides = [1, 1]} : vector<8x2048xf32> to vector<8x256xf32>
    %c6 = arith.constant 6 : index
    %c0_30 = arith.constant 0 : index
    %c0_31 = arith.constant 0 : index
    %47 = vector.load %arg4[%c6, %c0_30, %c0_31] : memref<8x8x256xf32, #tpu.memory_space<vmem>>, vector<1x8x256xf32>
    %48 = vector.shape_cast %47 : vector<1x8x256xf32> to vector<8x256xf32>
    %49 = vector.shape_cast %46 : vector<8x256xf32> to vector<1x8x256xf32>
    tpu.vector_store %arg4[%c6, %c0_30, %c0_31], %49 {strides = array<i32>} : memref<8x8x256xf32, #tpu.memory_space<vmem>>, vector<1x8x256xf32>,
    %50 = vector.extract_strided_slice %21 {offsets = [0, 1792], sizes = [8, 256], strides = [1, 1]} : vector<8x2048xf32> to vector<8x256xf32>
    %c7 = arith.constant 7 : index
    %c0_32 = arith.constant 0 : index
    %c0_33 = arith.constant 0 : index
    %51 = vector.load %arg4[%c7, %c0_32, %c0_33] : memref<8x8x256xf32, #tpu.memory_space<vmem>>, vector<1x8x256xf32>
    %52 = vector.shape_cast %51 : vector<1x8x256xf32> to vector<8x256xf32>
    %53 = vector.shape_cast %50 : vector<8x256xf32> to vector<1x8x256xf32>
    tpu.vector_store %arg4[%c7, %c0_32, %c0_33], %53 {strides = array<i32>} : memref<8x8x256xf32, #tpu.memory_space<vmem>>, vector<1x8x256xf32>,
    return
  }
  func.func @transform_0(%arg0: i32) -> (i32, i32) {
    %c0_i32 = arith.constant 0 : i32
    %c0_i32_0 = arith.constant 0 : i32
    return %arg0, %c0_i32 : i32, i32
  }
  func.func @transform_1(%arg0: i32) -> (i32, i32) {
    %c0_i32 = arith.constant 0 : i32
    %c0_i32_0 = arith.constant 0 : i32
    %c0_i32_1 = arith.constant 0 : i32
    return %c0_i32, %c0_i32_0 : i32, i32
  }
  func.func @transform_2(%arg0: i32) -> (i32, i32) {
    %c0_i32 = arith.constant 0 : i32
    %c0_i32_0 = arith.constant 0 : i32
    %c0_i32_1 = arith.constant 0 : i32
    return %c0_i32, %c0_i32_0 : i32, i32
  }
  func.func @transform_3(%arg0: i32) -> (i32, i32, i32) {
    %c0_i32 = arith.constant 0 : i32
    %c0_i32_0 = arith.constant 0 : i32
    %c0_i32_1 = arith.constant 0 : i32
    return %arg0, %c0_i32, %c0_i32_0 : i32, i32, i32
  }
}

</mosaic_0001>

<llo_original>
// kernel: output_layer.1
$region0: #{output_layer.1}
  #allocation0 [shape = 'u32[]', space=smem, size = 0x4, offset = 0x4, fixed_abs, tag = 'smem constant byte address 0x4 - core index']
  #allocation1 [shape = 'u32[72,128]{1,0:T(1,128)}', space=vmem, size = 0x9000, scoped, tag = 'internal scratch']
  #allocation2 [shape = 'f32[8,2048]{1,0:T(8,128)}', space=vmem, size = 0x10000, scoped, tag = 'scratch operand']
  %s0 = inlined_call_operand.vmem [shape: f32[64,64], index: 0, kind: input, shape index: {}]
  %s1 = inlined_call_operand.vmem [shape: f32[64,256], index: 1, kind: input, shape index: {}]
  %s2 = inlined_call_operand.vmem [shape: f32[8,8], index: 2, kind: input, shape index: {}]
  %s3 = inlined_call_operand.vmem [shape: f32[8,8,256], index: 3, kind: output, shape index: {}]
  %s4 = sld [smem:[#allocation0]]
  $region22: #{output_layer.1} parent=0
    _
  %s6 = ssub.s32 1, %s4
  %s7 = scalar_select 0, %s6, %s4
  // Predicated region
  $region2: #{output_layer.1} parent=0 // pred_check
    _
  $region3: #{output_layer.1} parent=0 // pred_check_branch
    %9 = sbr.rel (0) target = $region5
  $region4: #{output_layer.1} parent=0 // pred_region
    _
  $region5: #{output_layer.1} parent=0 // pred_fallthru
    _
  // Predicated region
  $region6: #{output_layer.1} parent=0 // pred_check
    _
  $region7: #{output_layer.1} parent=0 // pred_check_branch
    %11 = sbr.rel (0) target = $region9
  $region8: #{output_layer.1} parent=0 // pred_region
    _
  $region9: #{output_layer.1} parent=0 // pred_fallthru
    _
  // Predicated region
  $region10: #{output_layer.1} parent=0 // pred_check
    _
  $region11: #{output_layer.1} parent=0 // pred_check_branch
    %13 = sbr.rel (0) target = $region13
  $region12: #{output_layer.1} parent=0 // pred_region
    _
  $region13: #{output_layer.1} parent=0 // pred_fallthru
    _
  %v14 = vld [vmem:[%s0] sm:$0xff]
  %v15 = vld [vmem:[%s0 + $0x8] sm:$0xff]
  %v16 = vld [vmem:[%s0 + $0x10] sm:$0xff]
  %v17 = vld [vmem:[%s0 + $0x18] sm:$0xff]
  %v18 = vld [vmem:[%s0 + $0x20] sm:$0xff]
  %v19 = vld [vmem:[%s0 + $0x28] sm:$0xff]
  %v20 = vld [vmem:[%s0 + $0x30] sm:$0xff]
  %v21 = vld [vmem:[%s0 + $0x38] sm:$0xff]
  %v22 = vld [vmem:[%s1] sm:$0xff]
  %v23 = vld [vmem:[%s1 + $0x8] sm:$0xff]
  %v24 = vld [vmem:[%s1 + $0x10] sm:$0xff]
  %v25 = vld [vmem:[%s1 + $0x18] sm:$0xff]
  %v26 = vld [vmem:[%s1 + $0x20] sm:$0xff]
  %v27 = vld [vmem:[%s1 + $0x28] sm:$0xff]
  %v28 = vld [vmem:[%s1 + $0x30] sm:$0xff]
  %v29 = vld [vmem:[%s1 + $0x38] sm:$0xff]
  %v30 = vld [vmem:[%s1 + $0x40] sm:$0xff]
  %v31 = vld [vmem:[%s1 + $0x48] sm:$0xff]
  %v32 = vld [vmem:[%s1 + $0x50] sm:$0xff]
  %v33 = vld [vmem:[%s1 + $0x58] sm:$0xff]
  %v34 = vld [vmem:[%s1 + $0x60] sm:$0xff]
  %v35 = vld [vmem:[%s1 + $0x68] sm:$0xff]
  %v36 = vld [vmem:[%s1 + $0x70] sm:$0xff]
  %v37 = vld [vmem:[%s1 + $0x78] sm:$0xff]
  %vm38 = vcmask 523264
  %v40 = vsel %vm38, %v14, 0
  %v43 = vsel %vm38, %v15, 0
  %v46 = vsel %vm38, %v16, 0
  %v49 = vsel %vm38, %v17, 0
  %v52 = vsel %vm38, %v18, 0
  %v55 = vsel %vm38, %v19, 0
  %v58 = vsel %vm38, %v20, 0
  %v61 = vsel %vm38, %v21, 0
  %63 = vmatpush.msra.mxu0 0.0
  %64 = vmatpush.msra.mxu0 0.0
  %65 = vmatpush.msra.mxu0 0.0
  %66 = vmatpush.msra.mxu0 0.0
  %67 = vmatpush.msra.mxu0 0.0
  %68 = vmatpush.msra.mxu0 0.0
  %69 = vmatpush.msra.mxu0 0.0
  %70 = vmatpush.msra.mxu0 0.0
  %71 = vmatpush.msra.mxu0 %v36
  %72 = vmatpush.msra.mxu0 %v34
  %73 = vmatpush.msra.mxu0 %v32
  %74 = vmatpush.msra.mxu0 %v30
  %75 = vmatpush.msra.mxu0 %v28
  %76 = vmatpush.msra.mxu0 %v26
  %77 = vmatpush.msra.mxu0 %v24
  %78 = vmatpush.msra.mxu0 %v22
  %79 = vmatmul.f32.gmra.mxu0 %v40
  %v80 = vpop.f32.mrf.mxu0
  %v81 = vadd.f32 0.0, %v80
  %82 = vmatmul.f32.gmra.mxu0 %v43
  %v83 = vpop.f32.mrf.mxu0
  %v84 = vadd.f32 0.0, %v83
  %85 = vmatmul.f32.gmra.mxu0 %v46
  %v86 = vpop.f32.mrf.mxu0
  %v87 = vadd.f32 0.0, %v86
  %88 = vmatmul.f32.gmra.mxu0 %v49
  %v89 = vpop.f32.mrf.mxu0
  %v90 = vadd.f32 0.0, %v89
  %91 = vmatmul.f32.gmra.mxu0 %v52
  %v92 = vpop.f32.mrf.mxu0
  %v93 = vadd.f32 0.0, %v92
  %94 = vmatmul.f32.gmra.mxu0 %v55
  %v95 = vpop.f32.mrf.mxu0
  %v96 = vadd.f32 0.0, %v95
  %97 = vmatmul.f32.gmra.mxu0 %v58
  %v98 = vpop.f32.mrf.mxu0
  %v99 = vadd.f32 0.0, %v98
  %100 = vmatmul.f32.gmra.mxu0 %v61
  %v101 = vpop.f32.mrf.mxu0
  %v102 = vadd.f32 0.0, %v101
  %103 = vdwg.mxu0
  %104 = vmatpush.msra.mxu0 0.0
  %105 = vmatpush.msra.mxu0 0.0
  %106 = vmatpush.msra.mxu0 0.0
  %107 = vmatpush.msra.mxu0 0.0
  %108 = vmatpush.msra.mxu0 0.0
  %109 = vmatpush.msra.mxu0 0.0
  %110 = vmatpush.msra.mxu0 0.0
  %111 = vmatpush.msra.mxu0 0.0
  %112 = vmatpush.msra.mxu0 %v37
  %113 = vmatpush.msra.mxu0 %v35
  %114 = vmatpush.msra.mxu0 %v33
  %115 = vmatpush.msra.mxu0 %v31
  %116 = vmatpush.msra.mxu0 %v29
  %117 = vmatpush.msra.mxu0 %v27
  %118 = vmatpush.msra.mxu0 %v25
  %119 = vmatpush.msra.mxu0 %v23
  %120 = vmatmul.f32.gmra.mxu0 %v40
  %v121 = vpop.f32.mrf.mxu0
  %v122 = vadd.f32 0.0, %v121
  %123 = vmatmul.f32.gmra.mxu0 %v43
  %v124 = vpop.f32.mrf.mxu0
  %v125 = vadd.f32 0.0, %v124
  %126 = vmatmul.f32.gmra.mxu0 %v46
  %v127 = vpop.f32.mrf.mxu0
  %v128 = vadd.f32 0.0, %v127
  %129 = vmatmul.f32.gmra.mxu0 %v49
  %v130 = vpop.f32.mrf.mxu0
  %v131 = vadd.f32 0.0, %v130
  %132 = vmatmul.f32.gmra.mxu0 %v52
  %v133 = vpop.f32.mrf.mxu0
  %v134 = vadd.f32 0.0, %v133
  %135 = vmatmul.f32.gmra.mxu0 %v55
  %v136 = vpop.f32.mrf.mxu0
  %v137 = vadd.f32 0.0, %v136
  %138 = vmatmul.f32.gmra.mxu0 %v58
  %v139 = vpop.f32.mrf.mxu0
  %v140 = vadd.f32 0.0, %v139
  %141 = vmatmul.f32.gmra.mxu0 %v61
  %v142 = vpop.f32.mrf.mxu0
  %v143 = vadd.f32 0.0, %v142
  %144 = vdwg.mxu0
  %145 = vst [vmem:[#allocation2] sm:$0xff] %v81
  %146 = vst [vmem:[#allocation2 + $0x8] sm:$0xff] %v122
  %147 = vst [vmem:[#allocation2 + $0x10] sm:$0xff] %v84
  %148 = vst [vmem:[#allocation2 + $0x18] sm:$0xff] %v125
  %149 = vst [vmem:[#allocation2 + $0x20] sm:$0xff] %v87
  %150 = vst [vmem:[#allocation2 + $0x28] sm:$0xff] %v128
  %151 = vst [vmem:[#allocation2 + $0x30] sm:$0xff] %v90
  %152 = vst [vmem:[#allocation2 + $0x38] sm:$0xff] %v131
  %153 = vst [vmem:[#allocation2 + $0x40] sm:$0xff] %v93
  %154 = vst [vmem:[#allocation2 + $0x48] sm:$0xff] %v134
  %155 = vst [vmem:[#allocation2 + $0x50] sm:$0xff] %v96
  %156 = vst [vmem:[#allocation2 + $0x58] sm:$0xff] %v137
  %157 = vst [vmem:[#allocation2 + $0x60] sm:$0xff] %v99
  %158 = vst [vmem:[#allocation2 + $0x68] sm:$0xff] %v140
  %159 = vst [vmem:[#allocation2 + $0x70] sm:$0xff] %v102
  %160 = vst [vmem:[#allocation2 + $0x78] sm:$0xff] %v143
  %v161 = vld [vmem:[%s2] sm:$0xff]
  %v162 = vld [vmem:[#allocation2] sm:$0xff]
  %v163 = vld [vmem:[#allocation2 + $0x8] sm:$0xff]
  %v164 = vld [vmem:[#allocation2 + $0x10] sm:$0xff]
  %v165 = vld [vmem:[#allocation2 + $0x18] sm:$0xff]
  %v166 = vld [vmem:[#allocation2 + $0x20] sm:$0xff]
  %v167 = vld [vmem:[#allocation2 + $0x28] sm:$0xff]
  %v168 = vld [vmem:[#allocation2 + $0x30] sm:$0xff]
  %v169 = vld [vmem:[#allocation2 + $0x38] sm:$0xff]
  %v170 = vld [vmem:[#allocation2 + $0x40] sm:$0xff]
  %v171 = vld [vmem:[#allocation2 + $0x48] sm:$0xff]
  %v172 = vld [vmem:[#allocation2 + $0x50] sm:$0xff]
  %v173 = vld [vmem:[#allocation2 + $0x58] sm:$0xff]
  %v174 = vld [vmem:[#allocation2 + $0x60] sm:$0xff]
  %v175 = vld [vmem:[#allocation2 + $0x68] sm:$0xff]
  %v176 = vld [vmem:[#allocation2 + $0x70] sm:$0xff]
  %v177 = vld [vmem:[#allocation2 + $0x78] sm:$0xff]
  %vm178 = vcmask 64512
  %v180 = vsel %vm178, %v161, 0
  %182 = vmatpush.msra.mxu0 0.0
  %183 = vmatpush.msra.mxu0 0.0
  %184 = vmatpush.msra.mxu0 0.0
  %185 = vmatpush.msra.mxu0 0.0
  %186 = vmatpush.msra.mxu0 0.0
  %187 = vmatpush.msra.mxu0 0.0
  %188 = vmatpush.msra.mxu0 0.0
  %189 = vmatpush.msra.mxu0 0.0
  %190 = vmatpush.msra.mxu0 0.0
  %191 = vmatpush.msra.mxu0 0.0
  %192 = vmatpush.msra.mxu0 0.0
  %193 = vmatpush.msra.mxu0 0.0
  %194 = vmatpush.msra.mxu0 0.0
  %195 = vmatpush.msra.mxu0 0.0
  %196 = vmatpush.msra.mxu0 0.0
  %197 = vmatpush.msra.mxu0 %v162
  %198 = vmatmul.f32.gmra.mxu0 %v180
  %v199 = vpop.f32.mrf.mxu0
  %v200 = vadd.f32 0.0, %v199
  %201 = vdwg.mxu0
  %202 = vmatpush.msra.mxu0 0.0
  %203 = vmatpush.msra.mxu0 0.0
  %204 = vmatpush.msra.mxu0 0.0
  %205 = vmatpush.msra.mxu0 0.0
  %206 = vmatpush.msra.mxu0 0.0
  %207 = vmatpush.msra.mxu0 0.0
  %208 = vmatpush.msra.mxu0 0.0
  %209 = vmatpush.msra.mxu0 0.0
  %210 = vmatpush.msra.mxu0 0.0
  %211 = vmatpush.msra.mxu0 0.0
  %212 = vmatpush.msra.mxu0 0.0
  %213 = vmatpush.msra.mxu0 0.0
  %214 = vmatpush.msra.mxu0 0.0
  %215 = vmatpush.msra.mxu0 0.0
  %216 = vmatpush.msra.mxu0 0.0
  %217 = vmatpush.msra.mxu0 %v163
  %218 = vmatmul.f32.gmra.mxu0 %v180
  %v219 = vpop.f32.mrf.mxu0
  %v220 = vadd.f32 0.0, %v219
  %221 = vdwg.mxu0
  %222 = vmatpush.msra.mxu0 0.0
  %223 = vmatpush.msra.mxu0 0.0
  %224 = vmatpush.msra.mxu0 0.0
  %225 = vmatpush.msra.mxu0 0.0
  %226 = vmatpush.msra.mxu0 0.0
  %227 = vmatpush.msra.mxu0 0.0
  %228 = vmatpush.msra.mxu0 0.0
  %229 = vmatpush.msra.mxu0 0.0
  %230 = vmatpush.msra.mxu0 0.0
  %231 = vmatpush.msra.mxu0 0.0
  %232 = vmatpush.msra.mxu0 0.0
  %233 = vmatpush.msra.mxu0 0.0
  %234 = vmatpush.msra.mxu0 0.0
  %235 = vmatpush.msra.mxu0 0.0
  %236 = vmatpush.msra.mxu0 0.0
  %237 = vmatpush.msra.mxu0 %v164
  %238 = vmatmul.f32.gmra.mxu0 %v180
  %v239 = vpop.f32.mrf.mxu0
  %v240 = vadd.f32 0.0, %v239
  %241 = vdwg.mxu0
  %242 = vmatpush.msra.mxu0 0.0
  %243 = vmatpush.msra.mxu0 0.0
  %244 = vmatpush.msra.mxu0 0.0
  %245 = vmatpush.msra.mxu0 0.0
  %246 = vmatpush.msra.mxu0 0.0
  %247 = vmatpush.msra.mxu0 0.0
  %248 = vmatpush.msra.mxu0 0.0
  %249 = vmatpush.msra.mxu0 0.0
  %250 = vmatpush.msra.mxu0 0.0
  %251 = vmatpush.msra.mxu0 0.0
  %252 = vmatpush.msra.mxu0 0.0
  %253 = vmatpush.msra.mxu0 0.0
  %254 = vmatpush.msra.mxu0 0.0
  %255 = vmatpush.msra.mxu0 0.0
  %256 = vmatpush.msra.mxu0 0.0
  %257 = vmatpush.msra.mxu0 %v165
  %258 = vmatmul.f32.gmra.mxu0 %v180
  %v259 = vpop.f32.mrf.mxu0
  %v260 = vadd.f32 0.0, %v259
  %261 = vdwg.mxu0
  %262 = vmatpush.msra.mxu0 0.0
  %263 = vmatpush.msra.mxu0 0.0
  %264 = vmatpush.msra.mxu0 0.0
  %265 = vmatpush.msra.mxu0 0.0
  %266 = vmatpush.msra.mxu0 0.0
  %267 = vmatpush.msra.mxu0 0.0
  %268 = vmatpush.msra.mxu0 0.0
  %269 = vmatpush.msra.mxu0 0.0
  %270 = vmatpush.msra.mxu0 0.0
  %271 = vmatpush.msra.mxu0 0.0
  %272 = vmatpush.msra.mxu0 0.0
  %273 = vmatpush.msra.mxu0 0.0
  %274 = vmatpush.msra.mxu0 0.0
  %275 = vmatpush.msra.mxu0 0.0
  %276 = vmatpush.msra.mxu0 0.0
  %277 = vmatpush.msra.mxu0 %v166
  %278 = vmatmul.f32.gmra.mxu0 %v180
  %v279 = vpop.f32.mrf.mxu0
  %v280 = vadd.f32 0.0, %v279
  %281 = vdwg.mxu0
  %282 = vmatpush.msra.mxu0 0.0
  %283 = vmatpush.msra.mxu0 0.0
  %284 = vmatpush.msra.mxu0 0.0
  %285 = vmatpush.msra.mxu0 0.0
  %286 = vmatpush.msra.mxu0 0.0
  %287 = vmatpush.msra.mxu0 0.0
  %288 = vmatpush.msra.mxu0 0.0
  %289 = vmatpush.msra.mxu0 0.0
  %290 = vmatpush.msra.mxu0 0.0
  %291 = vmatpush.msra.mxu0 0.0
  %292 = vmatpush.msra.mxu0 0.0
  %293 = vmatpush.msra.mxu0 0.0
  %294 = vmatpush.msra.mxu0 0.0
  %295 = vmatpush.msra.mxu0 0.0
  %296 = vmatpush.msra.mxu0 0.0
  %297 = vmatpush.msra.mxu0 %v167
  %298 = vmatmul.f32.gmra.mxu0 %v180
  %v299 = vpop.f32.mrf.mxu0
  %v300 = vadd.f32 0.0, %v299
  %301 = vdwg.mxu0
  %302 = vmatpush.msra.mxu0 0.0
  %303 = vmatpush.msra.mxu0 0.0
  %304 = vmatpush.msra.mxu0 0.0
  %305 = vmatpush.msra.mxu0 0.0
  %306 = vmatpush.msra.mxu0 0.0
  %307 = vmatpush.msra.mxu0 0.0
  %308 = vmatpush.msra.mxu0 0.0
  %309 = vmatpush.msra.mxu0 0.0
  %310 = vmatpush.msra.mxu0 0.0
  %311 = vmatpush.msra.mxu0 0.0
  %312 = vmatpush.msra.mxu0 0.0
  %313 = vmatpush.msra.mxu0 0.0
  %314 = vmatpush.msra.mxu0 0.0
  %315 = vmatpush.msra.mxu0 0.0
  %316 = vmatpush.msra.mxu0 0.0
  %317 = vmatpush.msra.mxu0 %v168
  %318 = vmatmul.f32.gmra.mxu0 %v180
  %v319 = vpop.f32.mrf.mxu0
  %v320 = vadd.f32 0.0, %v319
  %321 = vdwg.mxu0
  %322 = vmatpush.msra.mxu0 0.0
  %323 = vmatpush.msra.mxu0 0.0
  %324 = vmatpush.msra.mxu0 0.0
  %325 = vmatpush.msra.mxu0 0.0
  %326 = vmatpush.msra.mxu0 0.0
  %327 = vmatpush.msra.mxu0 0.0
  %328 = vmatpush.msra.mxu0 0.0
  %329 = vmatpush.msra.mxu0 0.0
  %330 = vmatpush.msra.mxu0 0.0
  %331 = vmatpush.msra.mxu0 0.0
  %332 = vmatpush.msra.mxu0 0.0
  %333 = vmatpush.msra.mxu0 0.0
  %334 = vmatpush.msra.mxu0 0.0
  %335 = vmatpush.msra.mxu0 0.0
  %336 = vmatpush.msra.mxu0 0.0
  %337 = vmatpush.msra.mxu0 %v169
  %338 = vmatmul.f32.gmra.mxu0 %v180
  %v339 = vpop.f32.mrf.mxu0
  %v340 = vadd.f32 0.0, %v339
  %341 = vdwg.mxu0
  %342 = vmatpush.msra.mxu0 0.0
  %343 = vmatpush.msra.mxu0 0.0
  %344 = vmatpush.msra.mxu0 0.0
  %345 = vmatpush.msra.mxu0 0.0
  %346 = vmatpush.msra.mxu0 0.0
  %347 = vmatpush.msra.mxu0 0.0
  %348 = vmatpush.msra.mxu0 0.0
  %349 = vmatpush.msra.mxu0 0.0
  %350 = vmatpush.msra.mxu0 0.0
  %351 = vmatpush.msra.mxu0 0.0
  %352 = vmatpush.msra.mxu0 0.0
  %353 = vmatpush.msra.mxu0 0.0
  %354 = vmatpush.msra.mxu0 0.0
  %355 = vmatpush.msra.mxu0 0.0
  %356 = vmatpush.msra.mxu0 0.0
  %357 = vmatpush.msra.mxu0 %v170
  %358 = vmatmul.f32.gmra.mxu0 %v180
  %v359 = vpop.f32.mrf.mxu0
  %v360 = vadd.f32 0.0, %v359
  %361 = vdwg.mxu0
  %362 = vmatpush.msra.mxu0 0.0
  %363 = vmatpush.msra.mxu0 0.0
  %364 = vmatpush.msra.mxu0 0.0
  %365 = vmatpush.msra.mxu0 0.0
  %366 = vmatpush.msra.mxu0 0.0
  %367 = vmatpush.msra.mxu0 0.0
  %368 = vmatpush.msra.mxu0 0.0
  %369 = vmatpush.msra.mxu0 0.0
  %370 = vmatpush.msra.mxu0 0.0
  %371 = vmatpush.msra.mxu0 0.0
  %372 = vmatpush.msra.mxu0 0.0
  %373 = vmatpush.msra.mxu0 0.0
  %374 = vmatpush.msra.mxu0 0.0
  %375 = vmatpush.msra.mxu0 0.0
  %376 = vmatpush.msra.mxu0 0.0
  %377 = vmatpush.msra.mxu0 %v171
  %378 = vmatmul.f32.gmra.mxu0 %v180
  %v379 = vpop.f32.mrf.mxu0
  %v380 = vadd.f32 0.0, %v379
  %381 = vdwg.mxu0
  %382 = vmatpush.msra.mxu0 0.0
  %383 = vmatpush.msra.mxu0 0.0
  %384 = vmatpush.msra.mxu0 0.0
  %385 = vmatpush.msra.mxu0 0.0
  %386 = vmatpush.msra.mxu0 0.0
  %387 = vmatpush.msra.mxu0 0.0
  %388 = vmatpush.msra.mxu0 0.0
  %389 = vmatpush.msra.mxu0 0.0
  %390 = vmatpush.msra.mxu0 0.0
  %391 = vmatpush.msra.mxu0 0.0
  %392 = vmatpush.msra.mxu0 0.0
  %393 = vmatpush.msra.mxu0 0.0
  %394 = vmatpush.msra.mxu0 0.0
  %395 = vmatpush.msra.mxu0 0.0
  %396 = vmatpush.msra.mxu0 0.0
  %397 = vmatpush.msra.mxu0 %v172
  %398 = vmatmul.f32.gmra.mxu0 %v180
  %v399 = vpop.f32.mrf.mxu0
  %v400 = vadd.f32 0.0, %v399
  %401 = vdwg.mxu0
  %402 = vmatpush.msra.mxu0 0.0
  %403 = vmatpush.msra.mxu0 0.0
  %404 = vmatpush.msra.mxu0 0.0
  %405 = vmatpush.msra.mxu0 0.0
  %406 = vmatpush.msra.mxu0 0.0
  %407 = vmatpush.msra.mxu0 0.0
  %408 = vmatpush.msra.mxu0 0.0
  %409 = vmatpush.msra.mxu0 0.0
  %410 = vmatpush.msra.mxu0 0.0
  %411 = vmatpush.msra.mxu0 0.0
  %412 = vmatpush.msra.mxu0 0.0
  %413 = vmatpush.msra.mxu0 0.0
  %414 = vmatpush.msra.mxu0 0.0
  %415 = vmatpush.msra.mxu0 0.0
  %416 = vmatpush.msra.mxu0 0.0
  %417 = vmatpush.msra.mxu0 %v173
  %418 = vmatmul.f32.gmra.mxu0 %v180
  %v419 = vpop.f32.mrf.mxu0
  %v420 = vadd.f32 0.0, %v419
  %421 = vdwg.mxu0
  %422 = vmatpush.msra.mxu0 0.0
  %423 = vmatpush.msra.mxu0 0.0
  %424 = vmatpush.msra.mxu0 0.0
  %425 = vmatpush.msra.mxu0 0.0
  %426 = vmatpush.msra.mxu0 0.0
  %427 = vmatpush.msra.mxu0 0.0
  %428 = vmatpush.msra.mxu0 0.0
  %429 = vmatpush.msra.mxu0 0.0
  %430 = vmatpush.msra.mxu0 0.0
  %431 = vmatpush.msra.mxu0 0.0
  %432 = vmatpush.msra.mxu0 0.0
  %433 = vmatpush.msra.mxu0 0.0
  %434 = vmatpush.msra.mxu0 0.0
  %435 = vmatpush.msra.mxu0 0.0
  %436 = vmatpush.msra.mxu0 0.0
  %437 = vmatpush.msra.mxu0 %v174
  %438 = vmatmul.f32.gmra.mxu0 %v180
  %v439 = vpop.f32.mrf.mxu0
  %v440 = vadd.f32 0.0, %v439
  %441 = vdwg.mxu0
  %442 = vmatpush.msra.mxu0 0.0
  %443 = vmatpush.msra.mxu0 0.0
  %444 = vmatpush.msra.mxu0 0.0
  %445 = vmatpush.msra.mxu0 0.0
  %446 = vmatpush.msra.mxu0 0.0
  %447 = vmatpush.msra.mxu0 0.0
  %448 = vmatpush.msra.mxu0 0.0
  %449 = vmatpush.msra.mxu0 0.0
  %450 = vmatpush.msra.mxu0 0.0
  %451 = vmatpush.msra.mxu0 0.0
  %452 = vmatpush.msra.mxu0 0.0
  %453 = vmatpush.msra.mxu0 0.0
  %454 = vmatpush.msra.mxu0 0.0
  %455 = vmatpush.msra.mxu0 0.0
  %456 = vmatpush.msra.mxu0 0.0
  %457 = vmatpush.msra.mxu0 %v175
  %458 = vmatmul.f32.gmra.mxu0 %v180
  %v459 = vpop.f32.mrf.mxu0
  %v460 = vadd.f32 0.0, %v459
  %461 = vdwg.mxu0
  %462 = vmatpush.msra.mxu0 0.0
  %463 = vmatpush.msra.mxu0 0.0
  %464 = vmatpush.msra.mxu0 0.0
  %465 = vmatpush.msra.mxu0 0.0
  %466 = vmatpush.msra.mxu0 0.0
  %467 = vmatpush.msra.mxu0 0.0
  %468 = vmatpush.msra.mxu0 0.0
  %469 = vmatpush.msra.mxu0 0.0
  %470 = vmatpush.msra.mxu0 0.0
  %471 = vmatpush.msra.mxu0 0.0
  %472 = vmatpush.msra.mxu0 0.0
  %473 = vmatpush.msra.mxu0 0.0
  %474 = vmatpush.msra.mxu0 0.0
  %475 = vmatpush.msra.mxu0 0.0
  %476 = vmatpush.msra.mxu0 0.0
  %477 = vmatpush.msra.mxu0 %v176
  %478 = vmatmul.f32.gmra.mxu0 %v180
  %v479 = vpop.f32.mrf.mxu0
  %v480 = vadd.f32 0.0, %v479
  %481 = vdwg.mxu0
  %482 = vmatpush.msra.mxu0 0.0
  %483 = vmatpush.msra.mxu0 0.0
  %484 = vmatpush.msra.mxu0 0.0
  %485 = vmatpush.msra.mxu0 0.0
  %486 = vmatpush.msra.mxu0 0.0
  %487 = vmatpush.msra.mxu0 0.0
  %488 = vmatpush.msra.mxu0 0.0
  %489 = vmatpush.msra.mxu0 0.0
  %490 = vmatpush.msra.mxu0 0.0
  %491 = vmatpush.msra.mxu0 0.0
  %492 = vmatpush.msra.mxu0 0.0
  %493 = vmatpush.msra.mxu0 0.0
  %494 = vmatpush.msra.mxu0 0.0
  %495 = vmatpush.msra.mxu0 0.0
  %496 = vmatpush.msra.mxu0 0.0
  %497 = vmatpush.msra.mxu0 %v177
  %498 = vmatmul.f32.gmra.mxu0 %v180
  %v499 = vpop.f32.mrf.mxu0
  %v500 = vadd.f32 0.0, %v499
  %501 = vdwg.mxu0
  %502 = vst [vmem:[%s3] sm:$0xff] %v200
  %503 = vst [vmem:[%s3 + $0x8] sm:$0xff] %v220
  %s504 = scalar_lea.vmem %s3, 16
  %505 = vst [vmem:[%s504] sm:$0xff] %v240
  %506 = vst [vmem:[%s504 + $0x8] sm:$0xff] %v260
  %s507 = scalar_lea.vmem %s3, 32
  %508 = vst [vmem:[%s507] sm:$0xff] %v280
  %509 = vst [vmem:[%s507 + $0x8] sm:$0xff] %v300
  %s510 = scalar_lea.vmem %s3, 48
  %511 = vst [vmem:[%s510] sm:$0xff] %v320
  %512 = vst [vmem:[%s510 + $0x8] sm:$0xff] %v340
  %s513 = scalar_lea.vmem %s3, 64
  %514 = vst [vmem:[%s513] sm:$0xff] %v360
  %515 = vst [vmem:[%s513 + $0x8] sm:$0xff] %v380
  %s516 = scalar_lea.vmem %s3, 80
  %517 = vst [vmem:[%s516] sm:$0xff] %v400
  %518 = vst [vmem:[%s516 + $0x8] sm:$0xff] %v420
  %s519 = scalar_lea.vmem %s3, 96
  %520 = vst [vmem:[%s519] sm:$0xff] %v440
  %521 = vst [vmem:[%s519 + $0x8] sm:$0xff] %v460
  %s522 = scalar_lea.vmem %s3, 112
  %523 = vst [vmem:[%s522] sm:$0xff] %v480
  %524 = vst [vmem:[%s522 + $0x8] sm:$0xff] %v500
  // Predicated region
  $region14: #{output_layer.1} parent=0 // pred_check
    _
  $region15: #{output_layer.1} parent=0 // pred_check_branch
    %526 = sbr.rel (0) target = $region17
  $region16: #{output_layer.1} parent=0 // pred_region
    _
  $region17: #{output_layer.1} parent=0 // pred_fallthru
    _
  // Predicated region
  $region18: #{output_layer.1} parent=0 // pred_check
    _
  $region19: #{output_layer.1} parent=0 // pred_check_branch
    %528 = sbr.rel (0) target = $region21
  $region20: #{output_layer.1} parent=0 // pred_region
    _
  $region21: #{output_layer.1} parent=0 // pred_fallthru
    _

</llo_original>
